<compile_context>
chip_gen: v7x
topology: tpu7x:2x2x1
jax: 0.10.0
libtpu: 0.0.40
codegen_flags: <defaults>
</compile_context>

<pallas_src>
import jax
import jax.numpy as jnp
from jax.experimental import pallas as pl
from jax.experimental.pallas import tpu as pltpu

HIDDEN = 256


def critic_kernel(x_ref, w1_ref, b1_ref, w2_ref, b2_ref, w3_ref, b3_ref, o_ref):
    # l1: single fused matmul over the pre-concatenated (and zero-padded) input.
    # Input tile arrives f32; cast to bf16 in-kernel so the MXU gets bf16 operands.
    x = x_ref[...].astype(jnp.bfloat16)
    h1 = jnp.dot(x, w1_ref[...], preferred_element_type=jnp.float32) + b1_ref[...]
    h1 = jnp.maximum(h1, 0.0)                                     # relu(l1(.))

    # l2
    h2 = jnp.dot(h1.astype(w2_ref.dtype), w2_ref[...],
                 preferred_element_type=jnp.float32) + b2_ref[...]
    h2 = jnp.maximum(h2, 0.0)                                     # relu(l2(.))

    # l3: [TB,256] x [256,1] as VPU multiply + lane reduction (MXU stays free),
    # then relayout to a lane-dense [1, TB] row so the store is unmasked/full-vreg.
    q = jnp.sum(h2 * w3_ref[...], axis=-1, keepdims=True) + b3_ref[0, 0]   # [TB, 1]
    o_ref[0] = q.reshape(1, q.shape[0]).astype(o_ref.dtype)                # [1, TB]


def critic_forward(state, action, params, *, block_b=1024):
    """state: [B, state_dim], action: [B, action_dim] -> q: [B, 1] (float32)."""
    w1, b1, w2, b2, w3, b3 = params
    B, state_dim = state.shape
    action_dim = action.shape[1]
    d_in = state_dim + action_dim
    d_in_p, H = w1.shape

    # Adaptive batch tiling: fewest tiles (<= block_b rows each) with minimal padding.
    # Single tile for small B; >=2 tiles when B > block_b (v7x megacore sharding).
    num_tiles = int(pl.cdiv(B, block_b))
    tb = -(-B // num_tiles)
    if num_tiles > 1:
        tb = -(-tb // 8) * 8              # sublane-align partial tiles
    bp = num_tiles * tb

    # Fused concat (torch.cat) + zero-pad (batch -> bp rows, features -> d_in_p cols).
    # Stays f32; the bf16 cast happens in-kernel. Padded rows are sliced off at the end.
    x = jnp.concatenate([state.astype(jnp.float32), action.astype(jnp.float32)], axis=1)
    x = jnp.pad(x, ((0, bp - B), (0, d_in_p - d_in)))

    # VMEM estimate: double-buffered x/out tiles + (double-buffered) resident params +
    # f32/bf16 intermediates.  Only raise the scoped limit when actually needed.
    vmem_est = (2 * (tb * d_in_p * 4 + tb * 4)
                + 2 * ((d_in_p * H + H * H) * 2 + 3 * H * 4 + 4)
                + tb * H * (4 + 4 + 2 + 2))
    vmem_limit = None
    if vmem_est > (12 << 20):
        vmem_limit = int(min(max(vmem_est * 5 // 4, 32 << 20), 64 << 20))

    flops = 2 * bp * (d_in_p * H + H * H + H)
    bytes_accessed = (x.size * 4 + (w1.size + w2.size) * 2
                      + (b1.size + b2.size + w3.size + b3.size) * 4 + bp * 4)

    out = pl.pallas_call(
        critic_kernel,
        out_shape=jax.ShapeDtypeStruct((num_tiles, 1, tb), jnp.float32),
        grid=(num_tiles,),
        in_specs=[
            pl.BlockSpec((tb, d_in_p), lambda i: (i, 0)),        # x batch tile (f32)
            pl.BlockSpec((d_in_p, H), lambda i: (0, 0)),         # w1 (bf16), resident
            pl.BlockSpec((1, H), lambda i: (0, 0)),              # b1 (f32)
            pl.BlockSpec((H, H), lambda i: (0, 0)),              # w2 (bf16), resident
            pl.BlockSpec((1, H), lambda i: (0, 0)),              # b2 (f32)
            pl.BlockSpec((1, H), lambda i: (0, 0)),              # w3 row (f32)
            pl.BlockSpec(memory_space=pltpu.MemorySpace.SMEM),   # b3 scalar in SMEM
        ],
        out_specs=pl.BlockSpec((1, 1, tb), lambda i: (i, 0, 0)), # lane-dense q row
        compiler_params=pltpu.CompilerParams(
            dimension_semantics=("parallel",),
            vmem_limit_bytes=vmem_limit),
        cost_estimate=pl.CostEstimate(flops=flops, transcendentals=0,
                                      bytes_accessed=bytes_accessed),
    )(x, w1, b1, w2, b2, w3, b3)

    return out.reshape(bp)[:B].reshape(B, 1)


def init_critic_params(key, state_dim, action_dim, hidden=HIDDEN):
    """Synthetic init mirroring PyTorch Linear shapes, converted to kernel layout.

    PyTorch: l1.weight [256, d_in], l2.weight [256, 256], l3.weight [1, 256].
    Kernel layout: w1 transposed to [d_in, 256], zero-padded to [d_in_pad, 256] (bf16);
    w2 transposed to [256, 256] (bf16); w3 kept as a [1, 256] row (f32); biases f32.
    """
    d_in = state_dim + action_dim
    d_in_p = -(-d_in // 16) * 16          # bf16-sublane-friendly fan-in padding
    k1, k2, k3, k4, k5, k6 = jax.random.split(key, 6)

    def uniform(k, shape, fan_in):
        bound = 1.0 / jnp.sqrt(fan_in)
        return jax.random.uniform(k, shape, jnp.float32, -bound, bound)

    w1 = uniform(k1, (hidden, d_in), d_in).T                         # [d_in, 256]
    w1 = jnp.pad(w1, ((0, d_in_p - d_in), (0, 0))).astype(jnp.bfloat16)
    b1 = uniform(k2, (1, hidden), d_in)
    w2 = uniform(k3, (hidden, hidden), hidden).T.astype(jnp.bfloat16)  # [256, 256]
    b2 = uniform(k4, (1, hidden), hidden)
    w3 = uniform(k5, (1, hidden), hidden)                            # [1, 256] (l3.weight)
    b3 = uniform(k6, (1, 1), hidden)
    return (w1, b1, w2, b2, w3, b3)


def _reference(state, action, params):
    """Pure-JAX reference with the same bf16 rounding points as the kernel."""
    w1, b1, w2, b2, w3, b3 = params
    d_in = state.shape[1] + action.shape[1]
    x = jnp.concatenate([state, action], axis=1)
    x = x.astype(jnp.bfloat16).astype(jnp.float32)
    h1 = jnp.maximum(x @ w1.astype(jnp.float32)[:d_in] + b1, 0.0)
    h1 = h1.astype(jnp.bfloat16).astype(jnp.float32)
    h2 = jnp.maximum(h1 @ w2.astype(jnp.float32) + b2, 0.0)
    return jnp.sum(h2 * w3, axis=-1, keepdims=True) + b3[0, 0]


if __name__ == "__main__":
    key = jax.random.PRNGKey(0)
    k_p, k_s1, k_a1, k_s2, k_a2 = jax.random.split(key, 5)

    state_dim, action_dim = 16, 8
    params = init_critic_params(k_p, state_dim, action_dim)

    # Small batch: single grid step, tile == full batch (no padding).
    B1 = 2
    s1 = jax.random.normal(k_s1, (B1, state_dim), jnp.float32)
    a1 = jax.random.normal(k_a1, (B1, action_dim), jnp.float32)
    q1 = critic_forward(s1, a1, params)
    jax.block_until_ready(q1)
    r1 = _reference(s1, a1, params)
    assert q1.shape == (B1, 1)
    assert jnp.allclose(q1, r1, atol=1e-2, rtol=1e-2), (q1, r1)

    # Larger batch with a small block_b override: exercises the multi-tile grid,
    # adaptive tile sizing (3 tiles of 104 rows) and batch padding.
    B2 = 300
    s2 = jax.random.normal(k_s2, (B2, state_dim), jnp.float32)
    a2 = jax.random.normal(k_a2, (B2, action_dim), jnp.float32)
    q2 = critic_forward(s2, a2, params, block_b=128)
    jax.block_until_ready(q2)
    r2 = _reference(s2, a2, params)
    assert q2.shape == (B2, 1)
    assert jnp.allclose(q2, r2, atol=1e-2, rtol=1e-2)

    print("KERNEL_OK")
</pallas_src>

<mosaic_0001>
module attributes {stable_mosaic.version = 11 : i64} {
  func.func @critic_kernel(%arg0: i32, %arg1: memref<2x32xf32, #tpu.memory_space<vmem>>, %arg2: memref<32x256xbf16, #tpu.memory_space<vmem>>, %arg3: memref<1x256xf32, #tpu.memory_space<vmem>>, %arg4: memref<256x256xbf16, #tpu.memory_space<vmem>>, %arg5: memref<1x256xf32, #tpu.memory_space<vmem>>, %arg6: memref<1x256xf32, #tpu.memory_space<vmem>>, %arg7: memref<1x1xf32, #tpu.memory_space<smem>>, %arg8: memref<1x1x2xf32, #tpu.memory_space<vmem>>) attributes {dimension_semantics = [#tpu.dimension_semantics<parallel>], iteration_bounds = array<i64: 1>, scalar_prefetch = 0 : i64, scratch_operands = 0 : i64, tpu.core_type = #tpu.core_type<tc>, window_params = [{transform_indices = @transform_0, window_bounds = array<i64: 2, 32>}, {pipeline_mode = #tpu.pipeline_mode<synchronous>, transform_indices = @transform_1, window_bounds = array<i64: 32, 256>}, {pipeline_mode = #tpu.pipeline_mode<synchronous>, transform_indices = @transform_2, window_bounds = array<i64: 1, 256>}, {pipeline_mode = #tpu.pipeline_mode<synchronous>, transform_indices = @transform_3, window_bounds = array<i64: 256, 256>}, {pipeline_mode = #tpu.pipeline_mode<synchronous>, transform_indices = @transform_4, window_bounds = array<i64: 1, 256>}, {pipeline_mode = #tpu.pipeline_mode<synchronous>, transform_indices = @transform_5, window_bounds = array<i64: 1, 256>}, {transform_indices = @transform_6, window_bounds = array<i64: 1, 1>}, {transform_indices = @transform_7, window_bounds = array<i64: 1, 1, 2>}]} {
    %c0 = arith.constant 0 : index
    %c0_0 = arith.constant 0 : index
    %0 = vector.load %arg1[%c0, %c0_0] : memref<2x32xf32, #tpu.memory_space<vmem>>, vector<2x32xf32>
    %1 = arith.truncf %0 : vector<2x32xf32> to vector<2x32xbf16>
    %c0_1 = arith.constant 0 : index
    %c0_2 = arith.constant 0 : index
    %2 = vector.load %arg2[%c0_1, %c0_2] : memref<32x256xbf16, #tpu.memory_space<vmem>>, vector<32x256xbf16>
    %cst = arith.constant dense<0.000000e+00> : vector<2x256xf32>
    %3 = tpu.matmul %1, %2, %cst {dimension_numbers = #tpu.dot_dimension_numbers<[1], [0], [0], [1], [0, 0, 1, 1], [], []>} : vector<2x32xbf16>, vector<32x256xbf16>, vector<2x256xf32> -> vector<2x256xf32>
    %c0_3 = arith.constant 0 : index
    %c0_4 = arith.constant 0 : index
    %4 = vector.load %arg3[%c0_3, %c0_4] : memref<1x256xf32, #tpu.memory_space<vmem>>, vector<1x256xf32>
    %5 = vector.broadcast %4 : vector<1x256xf32> to vector<2x256xf32>
    %6 = arith.addf %3, %5 : vector<2x256xf32>
    %cst_5 = arith.constant 0.000000e+00 : f32
    %7 = vector.broadcast %cst_5 : f32 to vector<2x256xf32>
    %8 = arith.maximumf %6, %7 : vector<2x256xf32>
    %9 = arith.truncf %8 : vector<2x256xf32> to vector<2x256xbf16>
    %c0_6 = arith.constant 0 : index
    %c0_7 = arith.constant 0 : index
    %10 = vector.load %arg4[%c0_6, %c0_7] : memref<256x256xbf16, #tpu.memory_space<vmem>>, vector<256x256xbf16>
    %cst_8 = arith.constant dense<0.000000e+00> : vector<2x256xf32>
    %11 = tpu.matmul %9, %10, %cst_8 {dimension_numbers = #tpu.dot_dimension_numbers<[1], [0], [0], [1], [0, 0, 1, 1], [], []>} : vector<2x256xbf16>, vector<256x256xbf16>, vector<2x256xf32> -> vector<2x256xf32>
    %c0_9 = arith.constant 0 : index
    %c0_10 = arith.constant 0 : index
    %12 = vector.load %arg5[%c0_9, %c0_10] : memref<1x256xf32, #tpu.memory_space<vmem>>, vector<1x256xf32>
    %13 = vector.broadcast %12 : vector<1x256xf32> to vector<2x256xf32>
    %14 = arith.addf %11, %13 : vector<2x256xf32>
    %cst_11 = arith.constant 0.000000e+00 : f32
    %15 = vector.broadcast %cst_11 : f32 to vector<2x256xf32>
    %16 = arith.maximumf %14, %15 : vector<2x256xf32>
    %c0_12 = arith.constant 0 : index
    %c0_13 = arith.constant 0 : index
    %17 = vector.load %arg6[%c0_12, %c0_13] : memref<1x256xf32, #tpu.memory_space<vmem>>, vector<1x256xf32>
    %18 = vector.broadcast %17 : vector<1x256xf32> to vector<2x256xf32>
    %19 = arith.mulf %16, %18 : vector<2x256xf32>
    %cst_14 = arith.constant dense<0.000000e+00> : vector<2xf32>
    %20 = vector.multi_reduction <add>, %19, %cst_14 [1] : vector<2x256xf32> to vector<2xf32>
    %21 = vector.shape_cast %20 : vector<2xf32> to vector<2x1xf32>
    %c0_15 = arith.constant 0 : index
    %c0_16 = arith.constant 0 : index
    %22 = memref.load %arg7[%c0_15, %c0_16] : memref<1x1xf32, #tpu.memory_space<smem>>
    %23 = vector.broadcast %22 : f32 to vector<2x1xf32>
    %24 = arith.addf %21, %23 : vector<2x1xf32>
    %25 = vector.shape_cast %24 : vector<2x1xf32> to vector<1x2xf32>
    %c0_17 = arith.constant 0 : index
    %c0_18 = arith.constant 0 : index
    %c0_19 = arith.constant 0 : index
    %26 = vector.load %arg8[%c0_17, %c0_18, %c0_19] : memref<1x1x2xf32, #tpu.memory_space<vmem>>, vector<1x1x2xf32>
    %27 = vector.shape_cast %26 : vector<1x1x2xf32> to vector<1x2xf32>
    %28 = vector.shape_cast %25 : vector<1x2xf32> to vector<1x1x2xf32>
    tpu.vector_store %arg8[%c0_17, %c0_18, %c0_19], %28 {strides = array<i32>} : memref<1x1x2xf32, #tpu.memory_space<vmem>>, vector<1x1x2xf32>,
    return
  }
  func.func @transform_0(%arg0: i32) -> (i32, i32) {
    %c0_i32 = arith.constant 0 : i32
    %c0_i32_0 = arith.constant 0 : i32
    return %arg0, %c0_i32 : i32, i32
  }
  func.func @transform_1(%arg0: i32) -> (i32, i32) {
    %c0_i32 = arith.constant 0 : i32
    %c0_i32_0 = arith.constant 0 : i32
    %c0_i32_1 = arith.constant 0 : i32
    return %c0_i32, %c0_i32_0 : i32, i32
  }
  func.func @transform_2(%arg0: i32) -> (i32, i32) {
    %c0_i32 = arith.constant 0 : i32
    %c0_i32_0 = arith.constant 0 : i32
    %c0_i32_1 = arith.constant 0 : i32
    return %c0_i32, %c0_i32_0 : i32, i32
  }
  func.func @transform_3(%arg0: i32) -> (i32, i32) {
    %c0_i32 = arith.constant 0 : i32
    %c0_i32_0 = arith.constant 0 : i32
    %c0_i32_1 = arith.constant 0 : i32
    return %c0_i32, %c0_i32_0 : i32, i32
  }
  func.func @transform_4(%arg0: i32) -> (i32, i32) {
    %c0_i32 = arith.constant 0 : i32
    %c0_i32_0 = arith.constant 0 : i32
    %c0_i32_1 = arith.constant 0 : i32
    return %c0_i32, %c0_i32_0 : i32, i32
  }
  func.func @transform_5(%arg0: i32) -> (i32, i32) {
    %c0_i32 = arith.constant 0 : i32
    %c0_i32_0 = arith.constant 0 : i32
    %c0_i32_1 = arith.constant 0 : i32
    return %c0_i32, %c0_i32_0 : i32, i32
  }
  func.func @transform_6(%arg0: i32) -> (i32, i32) {
    %c0_i32 = arith.constant 0 : i32
    %c0_i32_0 = arith.constant 0 : i32
    %c0_i32_1 = arith.constant 0 : i32
    return %c0_i32, %c0_i32_0 : i32, i32
  }
  func.func @transform_7(%arg0: i32) -> (i32, i32, i32) {
    %c0_i32 = arith.constant 0 : i32
    %c0_i32_0 = arith.constant 0 : i32
    %c0_i32_1 = arith.constant 0 : i32
    return %arg0, %c0_i32, %c0_i32_0 : i32, i32, i32
  }
}

</mosaic_0001>

<llo_original>
// kernel: tpu_custom_call.1
$region0: #{tpu_custom_call.1}
  #allocation0 [shape = 'u32[]', space=smem, size = 0x4, offset = 0x4, fixed_abs, tag = 'smem constant byte address 0x4 - core index']
  #allocation1 [shape = 'u32[144,128]{1,0:T(1,128)}', space=vmem, size = 0x12000, scoped, tag = 'internal scratch']
  #allocation2 [shape = 'f32[1,1]{1,0:T(1,128)S(6)}', space=smem, size = 0x200, scoped, tag = 'scoped memory for tpu_custom_call.1']
  %s0 = inlined_call_operand.vmem [shape: f32[2,32], index: 0, kind: input, shape index: {}]
  %s1 = inlined_call_operand.hbm [shape: bf16[32,256], index: 1, kind: input, shape index: {}]
  %s2 = inlined_call_operand.vmem [shape: f32[1,256], index: 2, kind: input, shape index: {}]
  %s3 = inlined_call_operand.hbm [shape: bf16[256,256], index: 3, kind: input, shape index: {}]
  %s4 = inlined_call_operand.vmem [shape: f32[1,256], index: 4, kind: input, shape index: {}]
  %s5 = inlined_call_operand.vmem [shape: f32[1,256], index: 5, kind: input, shape index: {}]
  %s6 = inlined_call_operand.<no memory space> [shape: f32[1,1], index: 6, kind: input, shape index: {}]
  %s7 = inlined_call_operand.hbm [shape: f32[1,1,2], index: 7, kind: output, shape index: {}]
  %s8 = sld [smem:[#allocation0]]
  $region46: #{tpu_custom_call.1} parent=0
    _
  %s10 = ssub.s32 1, %s8
  %s11 = scalar_select 0, %s10, %s8
  %12 = sst [smem:[#allocation2]] %s6
  $region1: #{tpu_custom_call.1} parent=0
    #allocation3 [shape = 'u8[16384]{0}', space=vmem, size = 0x4000, scoped, tag = 'input window, operand 1, single buffered']
    #allocation4 [shape = 's32[1]{0}', space=sflag, size = 0x4, scoped, tag = 'scoped memory for tpu_custom_call.1']
    #allocation5 [shape = 's32[1]{0}', space=sflag, size = 0x4, scoped, tag = 'scoped memory for tpu_custom_call.1']
    #allocation6 [shape = 'u8[131072]{0}', space=vmem, size = 0x20000, scoped, tag = 'input window, operand 3, single buffered']
    #allocation7 [shape = 's32[1]{0}', space=sflag, size = 0x4, scoped, tag = 'scoped memory for tpu_custom_call.1']
    #allocation8 [shape = 'u8[512]{0}', space=vmem, size = 0x400, scoped, tag = 'output window, operand 0, single buffered']
    %13 = vsyncpa [#allocation4], 0
    %14 = vsyncpa [#allocation7], 0
    %15 = vsyncpa [#allocation5], 0
    // Predicated region
    $region2: #{tpu_custom_call.1} parent=1 // pred_check
      _
    $region3: #{tpu_custom_call.1} parent=1 // pred_check_branch
      %17 = sbr.rel (0) target = $region5
    $region4: #{tpu_custom_call.1} parent=1 // pred_region
      _
    $region5: #{tpu_custom_call.1} parent=1 // pred_fallthru
      _
    // Predicated region
    $region6: #{tpu_custom_call.1} parent=1 // pred_check
      _
    $region7: #{tpu_custom_call.1} parent=1 // pred_check_branch
      %19 = sbr.rel (0) target = $region9
    $region8: #{tpu_custom_call.1} parent=1 // pred_region
      %s21 = ssub.s32 512, 512
      %22 = vsyncadd [#allocation4], %s21
      %s23 = sshll.u32 [#allocation3], 4
      %s24 = int_to_ptr.vmem [resolvable:$true] %s23
      %29 = dma.hbm_to_vmem [thread:$0]  %s1, 512, %s24, [#allocation4], 128, 128, 8
    $region9: #{tpu_custom_call.1} parent=1 // pred_fallthru
      _
    // Predicated region
    $region10: #{tpu_custom_call.1} parent=1 // pred_check
      _
    $region11: #{tpu_custom_call.1} parent=1 // pred_check_branch
      %31 = sbr.rel (0) target = $region13
    $region12: #{tpu_custom_call.1} parent=1 // pred_region
      _
    $region13: #{tpu_custom_call.1} parent=1 // pred_fallthru
      _
    // Predicated region
    $region14: #{tpu_custom_call.1} parent=1 // pred_check
      _
    $region15: #{tpu_custom_call.1} parent=1 // pred_check_branch
      %33 = sbr.rel (0) target = $region17
    $region16: #{tpu_custom_call.1} parent=1 // pred_region
      %s35 = ssub.s32 4096, 4096
      %36 = vsyncadd [#allocation7], %s35
      %s37 = sshll.u32 [#allocation6], 4
      %s38 = int_to_ptr.vmem [resolvable:$true] %s37
      %43 = dma.hbm_to_vmem [thread:$0]  %s3, 4096, %s38, [#allocation7], 128, 128, 8
    $region17: #{tpu_custom_call.1} parent=1 // pred_fallthru
      _
    // Predicated region
    $region18: #{tpu_custom_call.1} parent=1 // pred_check
      _
    $region19: #{tpu_custom_call.1} parent=1 // pred_check_branch
      %45 = sbr.rel (0) target = $region21
    $region20: #{tpu_custom_call.1} parent=1 // pred_region
      _
    $region21: #{tpu_custom_call.1} parent=1 // pred_fallthru
      _
    // Predicated region
    $region22: #{tpu_custom_call.1} parent=1 // pred_check
      _
    $region23: #{tpu_custom_call.1} parent=1 // pred_check_branch
      %47 = sbr.rel (0) target = $region25
    $region24: #{tpu_custom_call.1} parent=1 // pred_region
      _
    $region25: #{tpu_custom_call.1} parent=1 // pred_fallthru
      _
    // Predicated region
    $region26: #{tpu_custom_call.1} parent=1 // pred_check
      _
    $region27: #{tpu_custom_call.1} parent=1 // pred_check_branch
      %49 = sbr.rel (0) target = $region29
    $region28: #{tpu_custom_call.1} parent=1 // pred_region
      _
    $region29: #{tpu_custom_call.1} parent=1 // pred_fallthru
      _
    // Predicated region
    $region30: #{tpu_custom_call.1} parent=1 // pred_check
      _
    $region31: #{tpu_custom_call.1} parent=1 // pred_check_branch
      %51 = sbr.rel (0) target = $region33
    $region32: #{tpu_custom_call.1} parent=1 // pred_region
      %52 = dma.done [#allocation4], 512
    $region33: #{tpu_custom_call.1} parent=1 // pred_fallthru
      _
    // Predicated region
    $region34: #{tpu_custom_call.1} parent=1 // pred_check
      _
    $region35: #{tpu_custom_call.1} parent=1 // pred_check_branch
      %54 = sbr.rel (0) target = $region37
    $region36: #{tpu_custom_call.1} parent=1 // pred_region
      %55 = dma.done [#allocation7], 4096
    $region37: #{tpu_custom_call.1} parent=1 // pred_fallthru
      _
    %v57 = vld [vmem:[%s0] sm:$0x3]
    %v58 = vpack.c.bf16 %v57, %v57
    %v59 = vld [vmem:[#allocation3] sm:$0xff]
    %v60 = vld [vmem:[#allocation3 + $0x8] sm:$0xff]
    %v61 = vld [vmem:[#allocation3 + $0x10] sm:$0xff]
    %v62 = vld [vmem:[#allocation3 + $0x18] sm:$0xff]
    %v63 = vld [vmem:[%s2] sm:$0x3]
    %v65 = vlaneseq
    %v66 = vshrl.u32 %v65, 7
    %v67 = vsub.s32 0, %v66
    %v68 = vrot.slane %v63, %v67
    %v69 = vlaneseq
    %v70 = vshrl.u32 %v69, 7
    %v71 = vsub.s32 1, %v70
    %v72 = vrot.slane %v63, %v71
    %v79 = vunpack.c.l.b16 %v59
    %v80 = vunpack.c.h.b16 %v59
    %v81 = vunpack.c.l.b16 %v60
    %v82 = vunpack.c.h.b16 %v60
    %v83 = vunpack.c.l.b16 %v61
    %v84 = vunpack.c.h.b16 %v61
    %v85 = vunpack.c.l.b16 %v62
    %v86 = vunpack.c.h.b16 %v62
    %v87 = vpack.c.b16 %v81, %v79
    %v88 = vpack.c.b16 %v82, %v80
    %v89 = vpack.c.b16 %v85, %v83
    %v90 = vpack.c.b16 %v86, %v84
    %vm95 = vcmask 261120
    %v97 = vsel %vm95, %v58, 0
    %99 = vmatprep.subr.bf16.mxu0 %v88
    %100 = vmatpush1.bf16.msra.mxu0 %v87
    %101 = vmatprep.subr.bf16.mxu0 %v90
    %102 = vmatpush1.bf16.msra.mxu0 %v89
    %103 = vmatprep.subr.bf16.mxu0 0
    %104 = vmatpush1.bf16.msra.mxu0 0
    %105 = vmatprep.subr.bf16.mxu0 0
    %106 = vmatpush1.bf16.msra.mxu0 0
    %107 = vmatprep.subr.bf16.mxu0 0
    %108 = vmatpush1.bf16.msra.mxu0 0
    %109 = vmatprep.subr.bf16.mxu0 0
    %110 = vmatpush1.bf16.msra.mxu0 0
    %111 = vmatprep.subr.bf16.mxu0 0
    %112 = vmatpush1.bf16.msra.mxu0 0
    %113 = vmatprep.subr.bf16.mxu0 0
    %114 = vmatpush1.bf16.msra.mxu0 0
    %115 = vmatprep.subr.bf16.mxu0 0
    %116 = vmatpush1.bf16.msra.mxu0 0
    %117 = vmatprep.subr.bf16.mxu0 0
    %118 = vmatpush1.bf16.msra.mxu0 0
    %119 = vmatprep.subr.bf16.mxu0 0
    %120 = vmatpush1.bf16.msra.mxu0 0
    %121 = vmatprep.subr.bf16.mxu0 0
    %122 = vmatpush1.bf16.msra.mxu0 0
    %123 = vmatprep.subr.bf16.mxu0 0
    %124 = vmatpush1.bf16.msra.mxu0 0
    %125 = vmatprep.subr.bf16.mxu0 0
    %126 = vmatpush1.bf16.msra.mxu0 0
    %127 = vmatprep.subr.bf16.mxu0 0
    %128 = vmatpush1.bf16.msra.mxu0 0
    %129 = vmatprep.subr.bf16.mxu0 0
    %130 = vmatpush1.bf16.msra.mxu0 0
    %131 = vmatprep.mubr.bf16.mxu0 0
    %132 = vmatmul.mubr.bf16.gmra.mrb[0].mxu0 %v97
    %v133 = vpop.f32.mrb[0].mxu0
    %v134 = vadd.f32 %v68, %v133
    %v135 = vpop.f32.mrb[0].mxu0
    %v136 = vadd.f32 %v72, %v135
    %v137 = vpop.f32.mrb[0].mxu0
    %v138 = vpop.f32.mrb[0].mxu0
    %139 = vdwg.mxu0
    %v140 = vmax.f32 %v134, 0.0
    %v141 = vmax.f32 %v136, 0.0
    %v142 = vpack.c.bf16 %v140, %v140
    %v143 = vpack.c.bf16 %v141, %v141
    %v144 = vld [vmem:[#allocation6] sm:$0xff]
    %v145 = vld [vmem:[#allocation6 + $0x8] sm:$0xff]
    %v146 = vld [vmem:[#allocation6 + $0x10] sm:$0xff]
    %v147 = vld [vmem:[#allocation6 + $0x18] sm:$0xff]
    %v148 = vld [vmem:[#allocation6 + $0x20] sm:$0xff]
    %v149 = vld [vmem:[#allocation6 + $0x28] sm:$0xff]
    %v150 = vld [vmem:[#allocation6 + $0x30] sm:$0xff]
    %v151 = vld [vmem:[#allocation6 + $0x38] sm:$0xff]
    %v152 = vld [vmem:[#allocation6 + $0x40] sm:$0xff]
    %v153 = vld [vmem:[#allocation6 + $0x48] sm:$0xff]
    %v154 = vld [vmem:[#allocation6 + $0x50] sm:$0xff]
    %v155 = vld [vmem:[#allocation6 + $0x58] sm:$0xff]
    %v156 = vld [vmem:[#allocation6 + $0x60] sm:$0xff]
    %v157 = vld [vmem:[#allocation6 + $0x68] sm:$0xff]
    %v158 = vld [vmem:[#allocation6 + $0x70] sm:$0xff]
    %v159 = vld [vmem:[#allocation6 + $0x78] sm:$0xff]
    %v160 = vld [vmem:[#allocation6 + $0x80] sm:$0xff]
    %v161 = vld [vmem:[#allocation6 + $0x88] sm:$0xff]
    %v162 = vld [vmem:[#allocation6 + $0x90] sm:$0xff]
    %v163 = vld [vmem:[#allocation6 + $0x98] sm:$0xff]
    %v164 = vld [vmem:[#allocation6 + $0xa0] sm:$0xff]
    %v165 = vld [vmem:[#allocation6 + $0xa8] sm:$0xff]
    %v166 = vld [vmem:[#allocation6 + $0xb0] sm:$0xff]
    %v167 = vld [vmem:[#allocation6 + $0xb8] sm:$0xff]
    %v168 = vld [vmem:[#allocation6 + $0xc0] sm:$0xff]
    %v169 = vld [vmem:[#allocation6 + $0xc8] sm:$0xff]
    %v170 = vld [vmem:[#allocation6 + $0xd0] sm:$0xff]
    %v171 = vld [vmem:[#allocation6 + $0xd8] sm:$0xff]
    %v172 = vld [vmem:[#allocation6 + $0xe0] sm:$0xff]
    %v173 = vld [vmem:[#allocation6 + $0xe8] sm:$0xff]
    %v174 = vld [vmem:[#allocation6 + $0xf0] sm:$0xff]
    %v175 = vld [vmem:[#allocation6 + $0xf8] sm:$0xff]
    %v176 = vld [vmem:[%s4] sm:$0x3]
    %v178 = vlaneseq
    %v179 = vshrl.u32 %v178, 7
    %v180 = vsub.s32 0, %v179
    %v181 = vrot.slane %v176, %v180
    %v182 = vlaneseq
    %v183 = vshrl.u32 %v182, 7
    %v184 = vsub.s32 1, %v183
    %v185 = vrot.slane %v176, %v184
    %v220 = vunpack.c.l.b16 %v144
    %v221 = vunpack.c.h.b16 %v144
    %v222 = vunpack.c.l.b16 %v145
    %v223 = vunpack.c.h.b16 %v145
    %v224 = vunpack.c.l.b16 %v146
    %v225 = vunpack.c.h.b16 %v146
    %v226 = vunpack.c.l.b16 %v147
    %v227 = vunpack.c.h.b16 %v147
    %v228 = vunpack.c.l.b16 %v148
    %v229 = vunpack.c.h.b16 %v148
    %v230 = vunpack.c.l.b16 %v149
    %v231 = vunpack.c.h.b16 %v149
    %v232 = vunpack.c.l.b16 %v150
    %v233 = vunpack.c.h.b16 %v150
    %v234 = vunpack.c.l.b16 %v151
    %v235 = vunpack.c.h.b16 %v151
    %v236 = vunpack.c.l.b16 %v152
    %v237 = vunpack.c.h.b16 %v152
    %v238 = vunpack.c.l.b16 %v153
    %v239 = vunpack.c.h.b16 %v153
    %v240 = vunpack.c.l.b16 %v154
    %v241 = vunpack.c.h.b16 %v154
    %v242 = vunpack.c.l.b16 %v155
    %v243 = vunpack.c.h.b16 %v155
    %v244 = vunpack.c.l.b16 %v156
    %v245 = vunpack.c.h.b16 %v156
    %v246 = vunpack.c.l.b16 %v157
    %v247 = vunpack.c.h.b16 %v157
    %v248 = vunpack.c.l.b16 %v158
    %v249 = vunpack.c.h.b16 %v158
    %v250 = vunpack.c.l.b16 %v159
    %v251 = vunpack.c.h.b16 %v159
    %v252 = vunpack.c.l.b16 %v160
    %v253 = vunpack.c.h.b16 %v160
    %v254 = vunpack.c.l.b16 %v161
    %v255 = vunpack.c.h.b16 %v161
    %v256 = vunpack.c.l.b16 %v162
    %v257 = vunpack.c.h.b16 %v162
    %v258 = vunpack.c.l.b16 %v163
    %v259 = vunpack.c.h.b16 %v163
    %v260 = vunpack.c.l.b16 %v164
    %v261 = vunpack.c.h.b16 %v164
    %v262 = vunpack.c.l.b16 %v165
    %v263 = vunpack.c.h.b16 %v165
    %v264 = vunpack.c.l.b16 %v166
    %v265 = vunpack.c.h.b16 %v166
    %v266 = vunpack.c.l.b16 %v167
    %v267 = vunpack.c.h.b16 %v167
    %v268 = vunpack.c.l.b16 %v168
    %v269 = vunpack.c.h.b16 %v168
    %v270 = vunpack.c.l.b16 %v169
    %v271 = vunpack.c.h.b16 %v169
    %v272 = vunpack.c.l.b16 %v170
    %v273 = vunpack.c.h.b16 %v170
    %v274 = vunpack.c.l.b16 %v171
    %v275 = vunpack.c.h.b16 %v171
    %v276 = vunpack.c.l.b16 %v172
    %v277 = vunpack.c.h.b16 %v172
    %v278 = vunpack.c.l.b16 %v173
    %v279 = vunpack.c.h.b16 %v173
    %v280 = vunpack.c.l.b16 %v174
    %v281 = vunpack.c.h.b16 %v174
    %v282 = vunpack.c.l.b16 %v175
    %v283 = vunpack.c.h.b16 %v175
    %v284 = vpack.c.b16 %v222, %v220
    %v285 = vpack.c.b16 %v223, %v221
    %v286 = vpack.c.b16 %v226, %v224
    %v287 = vpack.c.b16 %v227, %v225
    %v288 = vpack.c.b16 %v230, %v228
    %v289 = vpack.c.b16 %v231, %v229
    %v290 = vpack.c.b16 %v234, %v232
    %v291 = vpack.c.b16 %v235, %v233
    %v292 = vpack.c.b16 %v238, %v236
    %v293 = vpack.c.b16 %v239, %v237
    %v294 = vpack.c.b16 %v242, %v240
    %v295 = vpack.c.b16 %v243, %v241
    %v296 = vpack.c.b16 %v246, %v244
    %v297 = vpack.c.b16 %v247, %v245
    %v298 = vpack.c.b16 %v250, %v248
    %v299 = vpack.c.b16 %v251, %v249
    %v300 = vpack.c.b16 %v254, %v252
    %v301 = vpack.c.b16 %v255, %v253
    %v302 = vpack.c.b16 %v258, %v256
    %v303 = vpack.c.b16 %v259, %v257
    %v304 = vpack.c.b16 %v262, %v260
    %v305 = vpack.c.b16 %v263, %v261
    %v306 = vpack.c.b16 %v266, %v264
    %v307 = vpack.c.b16 %v267, %v265
    %v308 = vpack.c.b16 %v270, %v268
    %v309 = vpack.c.b16 %v271, %v269
    %v310 = vpack.c.b16 %v274, %v272
    %v311 = vpack.c.b16 %v275, %v273
    %v312 = vpack.c.b16 %v278, %v276
    %v313 = vpack.c.b16 %v279, %v277
    %v314 = vpack.c.b16 %v282, %v280
    %v315 = vpack.c.b16 %v283, %v281
    %348 = vmatprep.subr.bf16.mxu0 %v285
    %349 = vmatpush1.bf16.msra.mxu0 %v284
    %350 = vmatprep.subr.bf16.mxu0 %v287
    %351 = vmatpush1.bf16.msra.mxu0 %v286
    %352 = vmatprep.subr.bf16.mxu0 %v289
    %353 = vmatpush1.bf16.msra.mxu0 %v288
    %354 = vmatprep.subr.bf16.mxu0 %v291
    %355 = vmatpush1.bf16.msra.mxu0 %v290
    %356 = vmatprep.subr.bf16.mxu0 %v293
    %357 = vmatpush1.bf16.msra.mxu0 %v292
    %358 = vmatprep.subr.bf16.mxu0 %v295
    %359 = vmatpush1.bf16.msra.mxu0 %v294
    %360 = vmatprep.subr.bf16.mxu0 %v297
    %361 = vmatpush1.bf16.msra.mxu0 %v296
    %362 = vmatprep.subr.bf16.mxu0 %v299
    %363 = vmatpush1.bf16.msra.mxu0 %v298
    %364 = vmatprep.subr.bf16.mxu0 %v301
    %365 = vmatpush1.bf16.msra.mxu0 %v300
    %366 = vmatprep.subr.bf16.mxu0 %v303
    %367 = vmatpush1.bf16.msra.mxu0 %v302
    %368 = vmatprep.subr.bf16.mxu0 %v305
    %369 = vmatpush1.bf16.msra.mxu0 %v304
    %370 = vmatprep.subr.bf16.mxu0 %v307
    %371 = vmatpush1.bf16.msra.mxu0 %v306
    %372 = vmatprep.subr.bf16.mxu0 %v309
    %373 = vmatpush1.bf16.msra.mxu0 %v308
    %374 = vmatprep.subr.bf16.mxu0 %v311
    %375 = vmatpush1.bf16.msra.mxu0 %v310
    %376 = vmatprep.subr.bf16.mxu0 %v313
    %377 = vmatpush1.bf16.msra.mxu0 %v312
    %378 = vmatprep.subr.bf16.mxu0 %v315
    %379 = vmatpush1.bf16.msra.mxu0 %v314
    %380 = vmatprep.mubr.bf16.mxu0 %v143
    %381 = vmatmul.mubr.bf16.gmra.mrb[0].mxu0 %v142
    %v382 = vpop.f32.mrb[0].mxu0
    %v383 = vadd.f32 %v181, %v382
    %v384 = vpop.f32.mrb[0].mxu0
    %v385 = vadd.f32 %v185, %v384
    %v386 = vpop.f32.mrb[0].mxu0
    %v387 = vpop.f32.mrb[0].mxu0
    %388 = vdwg.mxu0
    %v389 = vmax.f32 %v383, 0.0
    %v390 = vmax.f32 %v385, 0.0
    %v391 = vld [vmem:[%s5] sm:$0x3]
    %v393 = vlaneseq
    %v394 = vshrl.u32 %v393, 7
    %v395 = vsub.s32 0, %v394
    %v396 = vrot.slane %v391, %v395
    %v397 = vlaneseq
    %v398 = vshrl.u32 %v397, 7
    %v399 = vsub.s32 1, %v398
    %v400 = vrot.slane %v391, %v399
    %v403 = vmul.f32 %v389, %v396
    %v404 = vmul.f32 %v390, %v400
    %vm405 = vcmask 1041408
    %v406 = vsel %vm405, %v403, 0.0
    %v407 = vsel %vm405, %v404, 0.0
    %v408 = vadd.f32 %v406, %v407
    %409 = vadd.xlane.f32.xlu0 %v408
    %v410 = vpop.xlane.xlu0 %409
    %s411 = sld [smem:[#allocation2]]
    %v412 = vstv %s411
    %v413 = vadd.f32 %v410, %v412
    %v415 = vlaneseq
    %v416 = vand.u32 %v415, 127
    %v417 = vlaneseq
    %v418 = vshrl.u32 %v417, 7
    %v419 = vsub.s32 %v416, %v418
    %v420 = vrot.slane %v413, %v419
    %vm422 = vcmask 8192
    %423 = vst.msk [vmem:[#allocation8] sm:$0x1] %vm422, %v420
    // Predicated region
    $region38: #{tpu_custom_call.1} parent=1 // pred_check
      _
    $region39: #{tpu_custom_call.1} parent=1 // pred_check_branch
      %425 = sbr.rel (0) target = $region41
    $region40: #{tpu_custom_call.1} parent=1 // pred_region
      %s427 = ssub.s32 16, 16
      %428 = vsyncadd [#allocation5], %s427
      %s430 = sshll.u32 [#allocation8], 4
      %s431 = int_to_ptr.vmem [resolvable:$true] %s430
      %433 = dma.vmem_to_hbm [thread:$0]  %s431, 16, %s7, [#allocation5]
    $region41: #{tpu_custom_call.1} parent=1 // pred_fallthru
      _
    // Predicated region
    $region42: #{tpu_custom_call.1} parent=1 // pred_check
      _
    $region43: #{tpu_custom_call.1} parent=1 // pred_check_branch
      %435 = sbr.rel (0) target = $region45
    $region44: #{tpu_custom_call.1} parent=1 // pred_region
      %436 = dma.done [#allocation5], 16
    $region45: #{tpu_custom_call.1} parent=1 // pred_fallthru
      _
    %437 = vsyncpa [#allocation4], 1
    %438 = vsyncpa [#allocation7], 1
    %439 = vsyncpa [#allocation5], 1

</llo_original>
